<compile_context>
chip_gen: v5e
topology: v5e:2x2
jax: 0.10.0
libtpu: 0.0.40
codegen_flags: <defaults>
</compile_context>

<pallas_src>
import functools

import jax
import jax.numpy as jnp
from jax import lax
from jax.experimental import pallas as pl
from jax.experimental.pallas import tpu as pltpu

EPS_COS = 1e-8      # eps used by cosine_distance_torch (clamp on squared norms)
EPS_NORM = 1e-12    # eps used by F.normalize(p=1, dim=1)
LEAKY_SLOPE = 0.25
LANE = 128
THRESH_ITERS = 32   # binary-search steps for the k-th order statistic

# Operand dtype for all MXU matmuls (accumulation is always f32).  bf16 is the
# MXU-native fast path; set to jnp.float32 for torch-faithful numerics.
MXU_DTYPE = jnp.bfloat16
_APPROX = MXU_DTYPE != jnp.float32   # approx reciprocal only on the fast path

_VMEM = pl.BlockSpec(memory_space=pltpu.MemorySpace.VMEM)


def _round_up(v, m):
    return ((v + m - 1) // m) * m


def _mxu(a):
    return a.astype(MXU_DTYPE)


def _leaky_relu(x):
    # slope 0.25: max(x, 0.25*x) == leaky_relu(x, 0.25)
    return jnp.maximum(x, LEAKY_SLOPE * x)


def _pad_lanes(a, width):
    if a.shape[-1] == width:
        return a
    return jnp.pad(a, ((0, 0), (0, width - a.shape[-1])))


# ---------------------------------------------------------------------------
# In-kernel bodies (everything operates on VMEM-resident values; none of the
# (N,N) intermediates ever touch HBM).
# ---------------------------------------------------------------------------
def _gram_body(x):
    """Cosine-similarity Gram: gram[i,j] = <x_i,x_j> / max(||x_i||*||x_j||, eps).

    Rows are rsqrt-normalized first (O(N*F), EUP) so no (N,N) divide is needed.
    gram is exactly symmetric (same operand on both MXU ports).  dist = 1 - gram
    is never materialized: downstream code works directly in the gram domain.
    """
    nsq = jnp.sum(x * x, axis=1, keepdims=True)                    # (N, 1)
    xn = _mxu(x * lax.rsqrt(jnp.maximum(nsq, EPS_COS)))            # EUP rsqrt
    # dim-1/dim-1 contraction == xn @ xn^T; Mosaic lowers this as a matmul with
    # a transposed RHS (check the dump for a stray vxpose if this becomes hot).
    return lax.dot_general(xn, xn, (((1,), (1,)), ((), ())),
                           preferred_element_type=jnp.float32)


def _kth_largest(gram, k, iters=THRESH_ITERS):
    """Threshold ~= (k+1)-th largest gram entry (0-based index k) over the full
    N^2 pool (diagonal included), i.e. 1 - (k-th smallest cosine distance),
    matching MOGONET's cal_adj_mat_parameter = sort(dist.reshape(-1))[k].

    Value-domain binary search: one (N,N) compare + select + reduction per step
    (VPU/XLU only, no MXU, no HBM).  Invariant kept each step:
        count(gram >= lo) >= k+1 > count(gram >= hi).
    Returns lo, so at least k+1 entries pass `gram >= thr`; after `iters` steps
    lo is within 4 * 2^-iters of the exact order statistic.
    Counts are accumulated in f32 (exact for N^2 < 2^24).
    """
    kf = jnp.full((1, 1), float(k + 1), jnp.float32)

    def body(_, carry):
        lo, hi = carry
        mid = 0.5 * (lo + hi)
        cnt = jnp.sum(jnp.where(gram >= mid, 1.0, 0.0), axis=1, keepdims=True)
        cnt = jnp.sum(cnt, axis=0, keepdims=True)                  # (1, 1)
        take = cnt >= kf
        return jnp.where(take, mid, lo), jnp.where(take, hi, mid)

    lo0 = jnp.full((1, 1), -2.0, jnp.float32)   # gram in [-1, 1] (+ fp noise)
    hi0 = jnp.full((1, 1), 2.0, jnp.float32)
    lo, _ = lax.fori_loop(0, iters, body, (lo0, hi0))
    return lo                                   # (1, 1), broadcasts vs (N, N)


def _adj_from_gram_body(gram, g_thr):
    """gen_adj_mat_tensor in the gram domain as one nested select:
         off-diag: gram if gram >= g_thr else 0     (== (1 - dist) * g)
         diag:     1                                 (self-edge zeroed, then +I)
       then row-wise L1 normalization (F.normalize, eps=1e-12).  gram is exactly
       symmetric, so the reference's max(adj, adj^T) symmetrization is a no-op.
    """
    n = gram.shape[0]
    diag = (lax.broadcasted_iota(jnp.int32, (n, n), 0)
            == lax.broadcasted_iota(jnp.int32, (n, n), 1))
    adj = jnp.where(diag, 1.0, jnp.where(gram >= g_thr, gram, 0.0))
    # abs() kept for F.normalize fidelity (weights can be negative if the
    # adaptive threshold admits similarities below 0).
    rowsum = jnp.sum(jnp.abs(adj), axis=1, keepdims=True)          # (N, 1)
    inv = pl.reciprocal(jnp.maximum(rowsum, EPS_NORM), approx=_APPROX)
    return adj * inv


def _gc_layer_body(x, w, b, adj):
    # torch order: support = x @ W ; out = adj @ support + b ; leaky_relu(0.25)
    support = jnp.dot(_mxu(x), _mxu(w), preferred_element_type=jnp.float32)
    out = jnp.dot(_mxu(adj), _mxu(support),
                  preferred_element_type=jnp.float32) + b
    return _leaky_relu(out)


# ---------------------------------------------------------------------------
# Fused kernels (one pallas_call each).
# ---------------------------------------------------------------------------
def _gcn_e_fused_kernel(x_ref, adj_ref, w1_ref, b1_ref, w2_ref, b2_ref,
                        w3_ref, b3_ref, out_ref, *, k):
    # gc1 (the initial adjacency comes in as an input, per the module signature)
    h = _gc_layer_body(x_ref[...], w1_ref[...], b1_ref[...], adj_ref[...])
    # adjacency regenerated from h entirely in VMEM (never leaves the kernel)
    gram = _gram_body(h)
    adj = _adj_from_gram_body(gram, _kth_largest(gram, k))
    # gc2  (F.dropout with training=False is the identity)
    h = _gc_layer_body(h, w2_ref[...], b2_ref[...], adj)
    gram = _gram_body(h)
    adj = _adj_from_gram_body(gram, _kth_largest(gram, k))
    # gc3
    out_ref[...] = _gc_layer_body(h, w3_ref[...], b3_ref[...], adj)


def _adj_build_kernel(x_ref, adj_ref, *, k):
    gram = _gram_body(x_ref[...])
    adj_ref[...] = _adj_from_gram_body(gram, _kth_largest(gram, k))


def _compiler_params(n):
    # ~4-5 live (N,N) f32 buffers + weights/activations; set the scoped-VMEM
    # budget explicitly (defaults: 16 MiB v5e / 32 MiB v6e+), clamped to v7x's
    # 64 MiB physical VMEM.
    need = 5 * n * n * 4 + (4 << 20)
    return pltpu.CompilerParams(
        vmem_limit_bytes=int(min(max(need, 16 << 20), 64 << 20)))


def gen_tr_adj_mat(x, adj_parameter, *, lane=LANE):
    """Initial adjacency from raw features: one fused kernel (cosine gram +
    in-kernel adaptive threshold + adjacency build + L1 normalize)."""
    # TODO(synk): cal_adj_mat_parameter / gen_adj_mat_tensor bodies were not in
    # the source file; implemented per the standard MOGONET cosine recipe
    # (threshold = (adj_parameter*N)-th smallest distance over the full N^2 pool,
    # diagonal self-edges zeroed, (1-dist) edge weights, +I, row L1 normalize).
    n, f = x.shape
    k = int(adj_parameter) * n
    x = _pad_lanes(x, _round_up(f, lane))        # lane-dense MXU operand
    return pl.pallas_call(
        functools.partial(_adj_build_kernel, k=k),
        out_shape=jax.ShapeDtypeStruct((n, n), jnp.float32),
        in_specs=[_VMEM],
        out_specs=_VMEM,
        compiler_params=_compiler_params(n),
    )(x)


def gcn_e_forward(params, adj_parameter, x, adj, hgcn_dim, dropout=0.5):
    """GCN_E.forward (inference semantics: dropout is the identity).
    Single pallas_call for the whole network."""
    (w1, b1), (w2, b2), (w3, b3) = params
    n = x.shape[0]
    k = int(adj_parameter) * n
    x = _pad_lanes(x, w1.shape[0])               # zero-pad features to 128 lanes
    out = pl.pallas_call(
        functools.partial(_gcn_e_fused_kernel, k=k),
        out_shape=jax.ShapeDtypeStruct((n, w3.shape[1]), jnp.float32),
        in_specs=[_VMEM] * 8,
        out_specs=_VMEM,
        compiler_params=_compiler_params(n),
    )(x, adj, w1, b1.reshape(1, -1), w2, b2.reshape(1, -1), w3, b3.reshape(1, -1))
    return out[:, : hgcn_dim[-1]]                # strip the lane padding


# ---------------------------------------------------------------------------
# Parameters (xavier_normal_ weights, zero bias, lane-padded).
# ---------------------------------------------------------------------------
def init_gcn_e_params(key, in_dim, hgcn_dim, lane=LANE):
    """xavier_normal_ std uses the *unpadded* fan-in/out; weights/biases are then
    zero-padded so every matmul operand is a multiple of 128 lanes.  Padded
    activation columns stay exactly zero, so the padded network computes the
    same function as the unpadded module."""
    dims = [in_dim] + list(hgcn_dim)
    params = []
    for i in range(3):
        key, sub = jax.random.split(key)
        fan_in, fan_out = dims[i], dims[i + 1]
        std = (2.0 / (fan_in + fan_out)) ** 0.5
        w = std * jax.random.normal(sub, (fan_in, fan_out), jnp.float32)
        pad_in, pad_out = _round_up(fan_in, lane), _round_up(fan_out, lane)
        w_p = jnp.zeros((pad_in, pad_out), jnp.float32).at[:fan_in, :fan_out].set(w)
        b_p = jnp.zeros((pad_out,), jnp.float32)
        params.append((w_p, b_p))
    return params


if __name__ == "__main__":
    key = jax.random.PRNGKey(0)
    k_x, k_p = jax.random.split(key)

    N, in_dim = 128, 32
    hgcn_dim = [64, 64, 32]
    adj_parameter = 2
    dropout = 0.5

    x = jax.random.normal(k_x, (N, in_dim), jnp.float32)
    params = init_gcn_e_params(k_p, in_dim, hgcn_dim)

    # Initial adjacency input built from the raw features (same cosine pipeline).
    adj0 = gen_tr_adj_mat(x, adj_parameter)

    out = gcn_e_forward(params, adj_parameter, x, adj0, hgcn_dim, dropout)
    out = jax.block_until_ready(out)
    assert out.shape == (N, hgcn_dim[2])
    assert bool(jnp.all(jnp.isfinite(out)))
    print("KERNEL_OK")
</pallas_src>

<mosaic_0001>
module attributes {stable_mosaic.version = 11 : i64} {
  func.func @_adj_build_kernel(%arg0: memref<128x128xf32, #tpu.memory_space<vmem>>, %arg1: memref<128x128xf32, #tpu.memory_space<vmem>>) attributes {dimension_semantics = [], scalar_prefetch = 0 : i64, scratch_operands = 0 : i64, tpu.core_type = #tpu.core_type<tc>} {
    %c0 = arith.constant 0 : index
    %c0_0 = arith.constant 0 : index
    %0 = vector.load %arg0[%c0, %c0_0] : memref<128x128xf32, #tpu.memory_space<vmem>>, vector<128x128xf32>
    %1 = arith.mulf %0, %0 : vector<128x128xf32>
    %cst = arith.constant dense<0.000000e+00> : vector<128xf32>
    %2 = vector.multi_reduction <add>, %1, %cst [1] : vector<128x128xf32> to vector<128xf32>
    %3 = vector.shape_cast %2 : vector<128xf32> to vector<128x1xf32>
    %cst_1 = arith.constant 9.99999993E-9 : f32
    %4 = vector.broadcast %cst_1 : f32 to vector<128x1xf32>
    %5 = arith.maximumf %3, %4 : vector<128x1xf32>
    %6 = math.rsqrt %5 : vector<128x1xf32>
    %7 = vector.broadcast %6 : vector<128x1xf32> to vector<128x128xf32>
    %8 = arith.mulf %0, %7 : vector<128x128xf32>
    %9 = arith.truncf %8 : vector<128x128xf32> to vector<128x128xbf16>
    %cst_2 = arith.constant dense<0.000000e+00> : vector<128x128xf32>
    %10 = tpu.matmul %9, %9, %cst_2 {dimension_numbers = #tpu.dot_dimension_numbers<[1], [1], [0], [0], [0, 0, 1, 0], [], []>} : vector<128x128xbf16>, vector<128x128xbf16>, vector<128x128xf32> -> vector<128x128xf32>
    %cst_3 = arith.constant 2.570000e+02 : f32
    %11 = vector.broadcast %cst_3 : f32 to vector<1x1xf32>
    %cst_4 = arith.constant -2.000000e+00 : f32
    %12 = vector.broadcast %cst_4 : f32 to vector<1x1xf32>
    %cst_5 = arith.constant 2.000000e+00 : f32
    %13 = vector.broadcast %cst_5 : f32 to vector<1x1xf32>
    %c0_i32 = arith.constant 0 : i32
    %c32_i32 = arith.constant 32 : i32
    %14 = arith.addi %c0_i32, %c32_i32 : i32
    %c1_i32 = arith.constant 1 : i32
    %15:2 = scf.for %arg2 = %c0_i32 to %14 step %c1_i32 iter_args(%arg3 = %12, %arg4 = %13) -> (vector<1x1xf32>, vector<1x1xf32>)  : i32 {
      %34 = arith.addf %arg3, %arg4 : vector<1x1xf32>
      %cst_12 = arith.constant 5.000000e-01 : f32
      %35 = vector.broadcast %cst_12 : f32 to vector<1x1xf32>
      %36 = arith.mulf %35, %34 : vector<1x1xf32>
      %37 = vector.broadcast %36 : vector<1x1xf32> to vector<128x128xf32>
      %38 = arith.cmpf oge, %10, %37 : vector<128x128xf32>
      %cst_13 = arith.constant 1.000000e+00 : f32
      %cst_14 = arith.constant 0.000000e+00 : f32
      %39 = vector.broadcast %cst_13 : f32 to vector<128x128xf32>
      %40 = vector.broadcast %cst_14 : f32 to vector<128x128xf32>
      %41 = arith.select %38, %39, %40 : vector<128x128xi1>, vector<128x128xf32>
      %cst_15 = arith.constant dense<0.000000e+00> : vector<128xf32>
      %42 = vector.multi_reduction <add>, %41, %cst_15 [1] : vector<128x128xf32> to vector<128xf32>
      %43 = vector.shape_cast %42 : vector<128xf32> to vector<128x1xf32>
      %cst_16 = arith.constant dense<0.000000e+00> : vector<1xf32>
      %44 = vector.multi_reduction <add>, %43, %cst_16 [0] : vector<128x1xf32> to vector<1xf32>
      %45 = vector.shape_cast %44 : vector<1xf32> to vector<1x1xf32>
      %46 = arith.cmpf oge, %45, %11 : vector<1x1xf32>
      %47 = arith.select %46, %36, %arg3 : vector<1x1xi1>, vector<1x1xf32>
      %48 = arith.select %46, %arg4, %36 : vector<1x1xi1>, vector<1x1xf32>
      scf.yield %47, %48 : vector<1x1xf32>, vector<1x1xf32>
    }
    %16 = tpu.iota {dimensions = array<i32: 0>} : vector<128x128xi32>
    %17 = tpu.iota {dimensions = array<i32: 1>} : vector<128x128xi32>
    %18 = arith.cmpi eq, %16, %17 : vector<128x128xi32>
    %19 = vector.broadcast %15#0 : vector<1x1xf32> to vector<128x128xf32>
    %20 = arith.cmpf oge, %10, %19 : vector<128x128xf32>
    %cst_6 = arith.constant 0.000000e+00 : f32
    %21 = vector.broadcast %cst_6 : f32 to vector<128x128xf32>
    %22 = arith.select %20, %10, %21 : vector<128x128xi1>, vector<128x128xf32>
    %cst_7 = arith.constant 1.000000e+00 : f32
    %23 = vector.broadcast %cst_7 : f32 to vector<128x128xf32>
    %24 = arith.select %18, %23, %22 : vector<128x128xi1>, vector<128x128xf32>
    %25 = math.absf %24 : vector<128x128xf32>
    %cst_8 = arith.constant dense<0.000000e+00> : vector<128xf32>
    %26 = vector.multi_reduction <add>, %25, %cst_8 [1] : vector<128x128xf32> to vector<128xf32>
    %27 = vector.shape_cast %26 : vector<128xf32> to vector<128x1xf32>
    %cst_9 = arith.constant 9.99999996E-13 : f32
    %28 = vector.broadcast %cst_9 : f32 to vector<128x1xf32>
    %29 = arith.maximumf %27, %28 : vector<128x1xf32>
    %30 = tpu.reciprocal %29 {approx = true} : vector<128x1xf32> -> vector<128x1xf32>
    %31 = vector.broadcast %30 : vector<128x1xf32> to vector<128x128xf32>
    %32 = arith.mulf %24, %31 : vector<128x128xf32>
    %c0_10 = arith.constant 0 : index
    %c0_11 = arith.constant 0 : index
    %33 = vector.load %arg1[%c0_10, %c0_11] : memref<128x128xf32, #tpu.memory_space<vmem>>, vector<128x128xf32>
    tpu.vector_store %arg1[%c0_10, %c0_11], %32 {strides = array<i32>} : memref<128x128xf32, #tpu.memory_space<vmem>>, vector<128x128xf32>,
    return
  }
}

</mosaic_0001>

<llo_original>
// kernel: tpu_custom_call.1
$region0: #{tpu_custom_call.1}
  #allocation0 [shape = 'u32[]', space=smem, size = 0x4, offset = 0x4, fixed_abs, tag = 'smem constant byte address 0x4 - core index']
  #allocation1 [shape = 'u32[72,128]{1,0:T(1,128)}', space=vmem, size = 0x9000, scoped, tag = 'internal scratch']
  %s0 = inlined_call_operand.hbm [shape: f32[128,128], index: 0, kind: input, shape index: {}]
  %s1 = inlined_call_operand.hbm [shape: f32[128,128], index: 1, kind: output, shape index: {}]
  %s2 = sld [smem:[#allocation0]]
  $region25: #{tpu_custom_call.1} parent=0
    _
  %s4 = ssub.s32 1, %s2
  %s5 = scalar_select 0, %s4, %s2
  $region1: #{tpu_custom_call.1} parent=0
    #allocation2 [shape = 'u8[65536]{0}', space=vmem, size = 0x10000, scoped, tag = 'input window, operand 0, single buffered']
    #allocation3 [shape = 's32[1]{0}', space=sflag, size = 0x4, scoped, tag = 'scoped memory for tpu_custom_call.1']
    #allocation4 [shape = 's32[1]{0}', space=sflag, size = 0x4, scoped, tag = 'scoped memory for tpu_custom_call.1']
    #allocation5 [shape = 'u8[65536]{0}', space=vmem, size = 0x10000, scoped, tag = 'output window, operand 0, single buffered']
    %6 = vsyncpa [#allocation3], 0
    %7 = vsyncpa [#allocation4], 0
    // Predicated region
    $region2: #{tpu_custom_call.1} parent=1 // pred_check
      _
    $region3: #{tpu_custom_call.1} parent=1 // pred_check_branch
      %9 = sbr.rel (0) target = $region5
    $region4: #{tpu_custom_call.1} parent=1 // pred_region
      %11 = vsyncadd [#allocation3], 0
      %s12 = sshll.u32 %s0, 4
      %s13 = int_to_ptr.hbm [resolvable:$true] %s12
      %s14 = sshll.u32 [#allocation2], 4
      %s15 = int_to_ptr.vmem [resolvable:$true] %s14
      %20 = dma.hbm_to_vmem [thread:$0]  %s13, 2048, %s15, [#allocation3], 128, 128, 8
    $region5: #{tpu_custom_call.1} parent=1 // pred_fallthru
      _
    // Predicated region
    $region6: #{tpu_custom_call.1} parent=1 // pred_check
      _
    $region7: #{tpu_custom_call.1} parent=1 // pred_check_branch
      %22 = sbr.rel (0) target = $region9
    $region8: #{tpu_custom_call.1} parent=1 // pred_region
      %24 = dma.done [#allocation3], 2048
    $region9: #{tpu_custom_call.1} parent=1 // pred_fallthru
      _
    %v25 = vld [vmem:[#allocation2] sm:$0xff]
    %v26 = vld [vmem:[#allocation2 + $0x8] sm:$0xff]
    %v27 = vld [vmem:[#allocation2 + $0x10] sm:$0xff]
    %v28 = vld [vmem:[#allocation2 + $0x18] sm:$0xff]
    %v29 = vld [vmem:[#allocation2 + $0x20] sm:$0xff]
    %v30 = vld [vmem:[#allocation2 + $0x28] sm:$0xff]
    %v31 = vld [vmem:[#allocation2 + $0x30] sm:$0xff]
    %v32 = vld [vmem:[#allocation2 + $0x38] sm:$0xff]
    %v33 = vld [vmem:[#allocation2 + $0x40] sm:$0xff]
    %v34 = vld [vmem:[#allocation2 + $0x48] sm:$0xff]
    %v35 = vld [vmem:[#allocation2 + $0x50] sm:$0xff]
    %v36 = vld [vmem:[#allocation2 + $0x58] sm:$0xff]
    %v37 = vld [vmem:[#allocation2 + $0x60] sm:$0xff]
    %v38 = vld [vmem:[#allocation2 + $0x68] sm:$0xff]
    %v39 = vld [vmem:[#allocation2 + $0x70] sm:$0xff]
    %v40 = vld [vmem:[#allocation2 + $0x78] sm:$0xff]
    %v41 = vmul.f32 %v25, %v25
    %v42 = vmul.f32 %v26, %v26
    %v43 = vmul.f32 %v27, %v27
    %v44 = vmul.f32 %v28, %v28
    %v45 = vmul.f32 %v29, %v29
    %v46 = vmul.f32 %v30, %v30
    %v47 = vmul.f32 %v31, %v31
    %v48 = vmul.f32 %v32, %v32
    %v49 = vmul.f32 %v33, %v33
    %v50 = vmul.f32 %v34, %v34
    %v51 = vmul.f32 %v35, %v35
    %v52 = vmul.f32 %v36, %v36
    %v53 = vmul.f32 %v37, %v37
    %v54 = vmul.f32 %v38, %v38
    %v55 = vmul.f32 %v39, %v39
    %v56 = vmul.f32 %v40, %v40
    %57 = vadd.xlane.f32.xlu0 %v41
    %v58 = vpop.xlane.xlu0 %57
    %59 = vadd.xlane.f32.xlu0 %v42
    %v60 = vpop.xlane.xlu0 %59
    %61 = vadd.xlane.f32.xlu0 %v43
    %v62 = vpop.xlane.xlu0 %61
    %63 = vadd.xlane.f32.xlu0 %v44
    %v64 = vpop.xlane.xlu0 %63
    %65 = vadd.xlane.f32.xlu0 %v45
    %v66 = vpop.xlane.xlu0 %65
    %67 = vadd.xlane.f32.xlu0 %v46
    %v68 = vpop.xlane.xlu0 %67
    %69 = vadd.xlane.f32.xlu0 %v47
    %v70 = vpop.xlane.xlu0 %69
    %71 = vadd.xlane.f32.xlu0 %v48
    %v72 = vpop.xlane.xlu0 %71
    %73 = vadd.xlane.f32.xlu0 %v49
    %v74 = vpop.xlane.xlu0 %73
    %75 = vadd.xlane.f32.xlu0 %v50
    %v76 = vpop.xlane.xlu0 %75
    %77 = vadd.xlane.f32.xlu0 %v51
    %v78 = vpop.xlane.xlu0 %77
    %79 = vadd.xlane.f32.xlu0 %v52
    %v80 = vpop.xlane.xlu0 %79
    %81 = vadd.xlane.f32.xlu0 %v53
    %v82 = vpop.xlane.xlu0 %81
    %83 = vadd.xlane.f32.xlu0 %v54
    %v84 = vpop.xlane.xlu0 %83
    %85 = vadd.xlane.f32.xlu0 %v55
    %v86 = vpop.xlane.xlu0 %85
    %87 = vadd.xlane.f32.xlu0 %v56
    %v88 = vpop.xlane.xlu0 %87
    %v89 = vmax.f32 %v58, 1e-08
    %v90 = vmax.f32 %v60, 1e-08
    %v91 = vmax.f32 %v62, 1e-08
    %v92 = vmax.f32 %v64, 1e-08
    %v93 = vmax.f32 %v66, 1e-08
    %v94 = vmax.f32 %v68, 1e-08
    %v95 = vmax.f32 %v70, 1e-08
    %v96 = vmax.f32 %v72, 1e-08
    %v97 = vmax.f32 %v74, 1e-08
    %v98 = vmax.f32 %v76, 1e-08
    %v99 = vmax.f32 %v78, 1e-08
    %v100 = vmax.f32 %v80, 1e-08
    %v101 = vmax.f32 %v82, 1e-08
    %v102 = vmax.f32 %v84, 1e-08
    %v103 = vmax.f32 %v86, 1e-08
    %v104 = vmax.f32 %v88, 1e-08
    %v105 = vrsqrt.pop %v89
    %v106 = vmul.f32 %v105, %v89
    %v107 = vmul.f32 %v106, %v105
    %v108 = vmul.f32 0.5, %v107
    %v109 = vsub.f32 1.5, %v108
    %v110 = vmul.f32 %v105, %v109
    %vm111 = vweird.f32 %v89
    %vm112 = vweird.f32 %v105
    %vm113 = vmor %vm111, %vm112
    %v114 = vsel %vm113, %v105, %v110
    %v115 = vrsqrt.pop %v90
    %v116 = vmul.f32 %v115, %v90
    %v117 = vmul.f32 %v116, %v115
    %v118 = vmul.f32 0.5, %v117
    %v119 = vsub.f32 1.5, %v118
    %v120 = vmul.f32 %v115, %v119
    %vm121 = vweird.f32 %v90
    %vm122 = vweird.f32 %v115
    %vm123 = vmor %vm121, %vm122
    %v124 = vsel %vm123, %v115, %v120
    %v125 = vrsqrt.pop %v91
    %v126 = vmul.f32 %v125, %v91
    %v127 = vmul.f32 %v126, %v125
    %v128 = vmul.f32 0.5, %v127
    %v129 = vsub.f32 1.5, %v128
    %v130 = vmul.f32 %v125, %v129
    %vm131 = vweird.f32 %v91
    %vm132 = vweird.f32 %v125
    %vm133 = vmor %vm131, %vm132
    %v134 = vsel %vm133, %v125, %v130
    %v135 = vrsqrt.pop %v92
    %v136 = vmul.f32 %v135, %v92
    %v137 = vmul.f32 %v136, %v135
    %v138 = vmul.f32 0.5, %v137
    %v139 = vsub.f32 1.5, %v138
    %v140 = vmul.f32 %v135, %v139
    %vm141 = vweird.f32 %v92
    %vm142 = vweird.f32 %v135
    %vm143 = vmor %vm141, %vm142
    %v144 = vsel %vm143, %v135, %v140
    %v145 = vrsqrt.pop %v93
    %v146 = vmul.f32 %v145, %v93
    %v147 = vmul.f32 %v146, %v145
    %v148 = vmul.f32 0.5, %v147
    %v149 = vsub.f32 1.5, %v148
    %v150 = vmul.f32 %v145, %v149
    %vm151 = vweird.f32 %v93
    %vm152 = vweird.f32 %v145
    %vm153 = vmor %vm151, %vm152
    %v154 = vsel %vm153, %v145, %v150
    %v155 = vrsqrt.pop %v94
    %v156 = vmul.f32 %v155, %v94
    %v157 = vmul.f32 %v156, %v155
    %v158 = vmul.f32 0.5, %v157
    %v159 = vsub.f32 1.5, %v158
    %v160 = vmul.f32 %v155, %v159
    %vm161 = vweird.f32 %v94
    %vm162 = vweird.f32 %v155
    %vm163 = vmor %vm161, %vm162
    %v164 = vsel %vm163, %v155, %v160
    %v165 = vrsqrt.pop %v95
    %v166 = vmul.f32 %v165, %v95
    %v167 = vmul.f32 %v166, %v165
    %v168 = vmul.f32 0.5, %v167
    %v169 = vsub.f32 1.5, %v168
    %v170 = vmul.f32 %v165, %v169
    %vm171 = vweird.f32 %v95
    %vm172 = vweird.f32 %v165
    %vm173 = vmor %vm171, %vm172
    %v174 = vsel %vm173, %v165, %v170
    %v175 = vrsqrt.pop %v96
    %v176 = vmul.f32 %v175, %v96
    %v177 = vmul.f32 %v176, %v175
    %v178 = vmul.f32 0.5, %v177
    %v179 = vsub.f32 1.5, %v178
    %v180 = vmul.f32 %v175, %v179
    %vm181 = vweird.f32 %v96
    %vm182 = vweird.f32 %v175
    %vm183 = vmor %vm181, %vm182
    %v184 = vsel %vm183, %v175, %v180
    %v185 = vrsqrt.pop %v97
    %v186 = vmul.f32 %v185, %v97
    %v187 = vmul.f32 %v186, %v185
    %v188 = vmul.f32 0.5, %v187
    %v189 = vsub.f32 1.5, %v188
    %v190 = vmul.f32 %v185, %v189
    %vm191 = vweird.f32 %v97
    %vm192 = vweird.f32 %v185
    %vm193 = vmor %vm191, %vm192
    %v194 = vsel %vm193, %v185, %v190
    %v195 = vrsqrt.pop %v98
    %v196 = vmul.f32 %v195, %v98
    %v197 = vmul.f32 %v196, %v195
    %v198 = vmul.f32 0.5, %v197
    %v199 = vsub.f32 1.5, %v198
    %v200 = vmul.f32 %v195, %v199
    %vm201 = vweird.f32 %v98
    %vm202 = vweird.f32 %v195
    %vm203 = vmor %vm201, %vm202
    %v204 = vsel %vm203, %v195, %v200
    %v205 = vrsqrt.pop %v99
    %v206 = vmul.f32 %v205, %v99
    %v207 = vmul.f32 %v206, %v205
    %v208 = vmul.f32 0.5, %v207
    %v209 = vsub.f32 1.5, %v208
    %v210 = vmul.f32 %v205, %v209
    %vm211 = vweird.f32 %v99
    %vm212 = vweird.f32 %v205
    %vm213 = vmor %vm211, %vm212
    %v214 = vsel %vm213, %v205, %v210
    %v215 = vrsqrt.pop %v100
    %v216 = vmul.f32 %v215, %v100
    %v217 = vmul.f32 %v216, %v215
    %v218 = vmul.f32 0.5, %v217
    %v219 = vsub.f32 1.5, %v218
    %v220 = vmul.f32 %v215, %v219
    %vm221 = vweird.f32 %v100
    %vm222 = vweird.f32 %v215
    %vm223 = vmor %vm221, %vm222
    %v224 = vsel %vm223, %v215, %v220
    %v225 = vrsqrt.pop %v101
    %v226 = vmul.f32 %v225, %v101
    %v227 = vmul.f32 %v226, %v225
    %v228 = vmul.f32 0.5, %v227
    %v229 = vsub.f32 1.5, %v228
    %v230 = vmul.f32 %v225, %v229
    %vm231 = vweird.f32 %v101
    %vm232 = vweird.f32 %v225
    %vm233 = vmor %vm231, %vm232
    %v234 = vsel %vm233, %v225, %v230
    %v235 = vrsqrt.pop %v102
    %v236 = vmul.f32 %v235, %v102
    %v237 = vmul.f32 %v236, %v235
    %v238 = vmul.f32 0.5, %v237
    %v239 = vsub.f32 1.5, %v238
    %v240 = vmul.f32 %v235, %v239
    %vm241 = vweird.f32 %v102
    %vm242 = vweird.f32 %v235
    %vm243 = vmor %vm241, %vm242
    %v244 = vsel %vm243, %v235, %v240
    %v245 = vrsqrt.pop %v103
    %v246 = vmul.f32 %v245, %v103
    %v247 = vmul.f32 %v246, %v245
    %v248 = vmul.f32 0.5, %v247
    %v249 = vsub.f32 1.5, %v248
    %v250 = vmul.f32 %v245, %v249
    %vm251 = vweird.f32 %v103
    %vm252 = vweird.f32 %v245
    %vm253 = vmor %vm251, %vm252
    %v254 = vsel %vm253, %v245, %v250
    %v255 = vrsqrt.pop %v104
    %v256 = vmul.f32 %v255, %v104
    %v257 = vmul.f32 %v256, %v255
    %v258 = vmul.f32 0.5, %v257
    %v259 = vsub.f32 1.5, %v258
    %v260 = vmul.f32 %v255, %v259
    %vm261 = vweird.f32 %v104
    %vm262 = vweird.f32 %v255
    %vm263 = vmor %vm261, %vm262
    %v264 = vsel %vm263, %v255, %v260
    %v265 = vmul.f32 %v25, %v114
    %v266 = vmul.f32 %v26, %v124
    %v267 = vmul.f32 %v27, %v134
    %v268 = vmul.f32 %v28, %v144
    %v269 = vmul.f32 %v29, %v154
    %v270 = vmul.f32 %v30, %v164
    %v271 = vmul.f32 %v31, %v174
    %v272 = vmul.f32 %v32, %v184
    %v273 = vmul.f32 %v33, %v194
    %v274 = vmul.f32 %v34, %v204
    %v275 = vmul.f32 %v35, %v214
    %v276 = vmul.f32 %v36, %v224
    %v277 = vmul.f32 %v37, %v234
    %v278 = vmul.f32 %v38, %v244
    %v279 = vmul.f32 %v39, %v254
    %v280 = vmul.f32 %v40, %v264
    %v281 = vpack.c.bf16 %v266, %v265
    %v282 = vpack.c.bf16 %v268, %v267
    %v283 = vpack.c.bf16 %v270, %v269
    %v284 = vpack.c.bf16 %v272, %v271
    %v285 = vpack.c.bf16 %v274, %v273
    %v286 = vpack.c.bf16 %v276, %v275
    %v287 = vpack.c.bf16 %v278, %v277
    %v288 = vpack.c.bf16 %v280, %v279
    %289 = vmatpush.bf16.xpose.msra.mxu0 %v288
    %290 = vmatpush.bf16.xpose.msra.mxu0 %v287
    %291 = vmatpush.bf16.xpose.msra.mxu0 %v286
    %292 = vmatpush.bf16.xpose.msra.mxu0 %v285
    %293 = vmatpush.bf16.xpose.msra.mxu0 %v284
    %294 = vmatpush.bf16.xpose.msra.mxu0 %v283
    %295 = vmatpush.bf16.xpose.msra.mxu0 %v282
    %296 = vmatpush.bf16.xpose.msra.mxu0 %v281
    %297 = vmatmul.bf16.gmra.mxu0 %v281
    %v298 = vpop.f32.mrf.mxu0
    %v299 = vadd.f32 0.0, %v298
    %v300 = vpop.f32.mrf.mxu0
    %v301 = vadd.f32 0.0, %v300
    %302 = vmatmul.bf16.gmra.mxu0 %v282
    %v303 = vpop.f32.mrf.mxu0
    %v304 = vadd.f32 0.0, %v303
    %v305 = vpop.f32.mrf.mxu0
    %v306 = vadd.f32 0.0, %v305
    %307 = vmatmul.bf16.gmra.mxu0 %v283
    %v308 = vpop.f32.mrf.mxu0
    %v309 = vadd.f32 0.0, %v308
    %v310 = vpop.f32.mrf.mxu0
    %v311 = vadd.f32 0.0, %v310
    %312 = vmatmul.bf16.gmra.mxu0 %v284
    %v313 = vpop.f32.mrf.mxu0
    %v314 = vadd.f32 0.0, %v313
    %v315 = vpop.f32.mrf.mxu0
    %v316 = vadd.f32 0.0, %v315
    %317 = vmatmul.bf16.gmra.mxu0 %v285
    %v318 = vpop.f32.mrf.mxu0
    %v319 = vadd.f32 0.0, %v318
    %v320 = vpop.f32.mrf.mxu0
    %v321 = vadd.f32 0.0, %v320
    %322 = vmatmul.bf16.gmra.mxu0 %v286
    %v323 = vpop.f32.mrf.mxu0
    %v324 = vadd.f32 0.0, %v323
    %v325 = vpop.f32.mrf.mxu0
    %v326 = vadd.f32 0.0, %v325
    %327 = vmatmul.bf16.gmra.mxu0 %v287
    %v328 = vpop.f32.mrf.mxu0
    %v329 = vadd.f32 0.0, %v328
    %v330 = vpop.f32.mrf.mxu0
    %v331 = vadd.f32 0.0, %v330
    %332 = vmatmul.bf16.gmra.mxu0 %v288
    %v333 = vpop.f32.mrf.mxu0
    %v334 = vadd.f32 0.0, %v333
    %v335 = vpop.f32.mrf.mxu0
    %v336 = vadd.f32 0.0, %v335
    %337 = vdwg.mxu0
    loop: start=0, step=1, limit=32
    $region10: #{tpu_custom_call.1} parent=1 // loop_pre_header
      _
    $region11: #{tpu_custom_call.1} parent=1 // loop_header
      %s339 = sphi 0, %s343
      %p340 = scmp.ge.s32.totalorder %s339, 32
      %v344 = vphi -2.0, %v434
      %v345 = vphi 2.0, %v435
    $region12: #{tpu_custom_call.1} parent=1 // loop_header_branch
      %342 = sbr.rel (%p340) target = $region16
    $region13: #{tpu_custom_call.1} parent=1 // loop_body
      %v346 = vadd.f32 %v344, %v345
      %v347 = vmul.f32 %v346, 0.5
      %vm348 = vcmp.ge.f32.partialorder %v299, %v347
      %vm349 = vcmp.ge.f32.partialorder %v301, %v347
      %vm350 = vcmp.ge.f32.partialorder %v304, %v347
      %vm351 = vcmp.ge.f32.partialorder %v306, %v347
      %vm352 = vcmp.ge.f32.partialorder %v309, %v347
      %vm353 = vcmp.ge.f32.partialorder %v311, %v347
      %vm354 = vcmp.ge.f32.partialorder %v314, %v347
      %vm355 = vcmp.ge.f32.partialorder %v316, %v347
      %vm356 = vcmp.ge.f32.partialorder %v319, %v347
      %vm357 = vcmp.ge.f32.partialorder %v321, %v347
      %vm358 = vcmp.ge.f32.partialorder %v324, %v347
      %vm359 = vcmp.ge.f32.partialorder %v326, %v347
      %vm360 = vcmp.ge.f32.partialorder %v329, %v347
      %vm361 = vcmp.ge.f32.partialorder %v331, %v347
      %vm362 = vcmp.ge.f32.partialorder %v334, %v347
      %vm363 = vcmp.ge.f32.partialorder %v336, %v347
      %v364 = vsel %vm348, 1.0, 0.0
      %v365 = vsel %vm349, 1.0, 0.0
      %v366 = vsel %vm350, 1.0, 0.0
      %v367 = vsel %vm351, 1.0, 0.0
      %v368 = vsel %vm352, 1.0, 0.0
      %v369 = vsel %vm353, 1.0, 0.0
      %v370 = vsel %vm354, 1.0, 0.0
      %v371 = vsel %vm355, 1.0, 0.0
      %v372 = vsel %vm356, 1.0, 0.0
      %v373 = vsel %vm357, 1.0, 0.0
      %v374 = vsel %vm358, 1.0, 0.0
      %v375 = vsel %vm359, 1.0, 0.0
      %v376 = vsel %vm360, 1.0, 0.0
      %v377 = vsel %vm361, 1.0, 0.0
      %v378 = vsel %vm362, 1.0, 0.0
      %v379 = vsel %vm363, 1.0, 0.0
      %380 = vadd.xlane.f32.xlu0 %v364
      %v381 = vpop.xlane.xlu0 %380
      %382 = vadd.xlane.f32.xlu0 %v365
      %v383 = vpop.xlane.xlu0 %382
      %384 = vadd.xlane.f32.xlu0 %v366
      %v385 = vpop.xlane.xlu0 %384
      %386 = vadd.xlane.f32.xlu0 %v367
      %v387 = vpop.xlane.xlu0 %386
      %388 = vadd.xlane.f32.xlu0 %v368
      %v389 = vpop.xlane.xlu0 %388
      %390 = vadd.xlane.f32.xlu0 %v369
      %v391 = vpop.xlane.xlu0 %390
      %392 = vadd.xlane.f32.xlu0 %v370
      %v393 = vpop.xlane.xlu0 %392
      %394 = vadd.xlane.f32.xlu0 %v371
      %v395 = vpop.xlane.xlu0 %394
      %396 = vadd.xlane.f32.xlu0 %v372
      %v397 = vpop.xlane.xlu0 %396
      %398 = vadd.xlane.f32.xlu0 %v373
      %v399 = vpop.xlane.xlu0 %398
      %400 = vadd.xlane.f32.xlu0 %v374
      %v401 = vpop.xlane.xlu0 %400
      %402 = vadd.xlane.f32.xlu0 %v375
      %v403 = vpop.xlane.xlu0 %402
      %404 = vadd.xlane.f32.xlu0 %v376
      %v405 = vpop.xlane.xlu0 %404
      %406 = vadd.xlane.f32.xlu0 %v377
      %v407 = vpop.xlane.xlu0 %406
      %408 = vadd.xlane.f32.xlu0 %v378
      %v409 = vpop.xlane.xlu0 %408
      %410 = vadd.xlane.f32.xlu0 %v379
      %v411 = vpop.xlane.xlu0 %410
      %v412 = vadd.f32 %v381, %v383
      %v413 = vadd.f32 %v412, %v385
      %v414 = vadd.f32 %v413, %v387
      %v415 = vadd.f32 %v414, %v389
      %v416 = vadd.f32 %v415, %v391
      %v417 = vadd.f32 %v416, %v393
      %v418 = vadd.f32 %v417, %v395
      %v419 = vadd.f32 %v418, %v397
      %v420 = vadd.f32 %v419, %v399
      %v421 = vadd.f32 %v420, %v401
      %v422 = vadd.f32 %v421, %v403
      %v423 = vadd.f32 %v422, %v405
      %v424 = vadd.f32 %v423, %v407
      %v425 = vadd.f32 %v424, %v409
      %v426 = vadd.f32 %v425, %v411
      %v427 = vrot.slane %v426, 4
      %v428 = vadd.f32 %v426, %v427
      %v429 = vrot.slane %v428, 2
      %v430 = vadd.f32 %v428, %v429
      %v431 = vrot.slane %v430, 1
      %v432 = vadd.f32 %v430, %v431
      %vm433 = vcmp.ge.f32.partialorder %v432, 257.0
      %v434 = vsel %vm433, %v347, %v344
      %v435 = vsel %vm433, %v345, %v347
    $region14: #{tpu_custom_call.1} parent=1 // loop_footer
      %s343 = sadd.s32 1, %s339
    $region15: #{tpu_custom_call.1} parent=1 // loop_footer_branch
      %338 = sbr.rel target = $region11
    $region16: #{tpu_custom_call.1} parent=1 // loop_exit
      _
    %v436 = vlaneseq
    %v437 = vshrl.u32 %v436, 7
    %v438 = vadd.s32 %v437, 8
    %v439 = vadd.s32 %v437, 16
    %v440 = vadd.s32 %v437, 24
    %v441 = vadd.s32 %v437, 32
    %v442 = vadd.s32 %v437, 40
    %v443 = vadd.s32 %v437, 48
    %v444 = vadd.s32 %v437, 56
    %v445 = vadd.s32 %v437, 64
    %v446 = vadd.s32 %v437, 72
    %v447 = vadd.s32 %v437, 80
    %v448 = vadd.s32 %v437, 88
    %v449 = vadd.s32 %v437, 96
    %v450 = vadd.s32 %v437, 104
    %v451 = vadd.s32 %v437, 112
    %v452 = vadd.s32 %v437, 120
    %v453 = vlaneseq
    %v454 = vand.u32 %v453, 127
    %vm455 = vcmp.eq.s32.totalorder %v437, %v454
    %vm456 = vcmp.eq.s32.totalorder %v438, %v454
    %vm457 = vcmp.eq.s32.totalorder %v439, %v454
    %vm458 = vcmp.eq.s32.totalorder %v440, %v454
    %vm459 = vcmp.eq.s32.totalorder %v441, %v454
    %vm460 = vcmp.eq.s32.totalorder %v442, %v454
    %vm461 = vcmp.eq.s32.totalorder %v443, %v454
    %vm462 = vcmp.eq.s32.totalorder %v444, %v454
    %vm463 = vcmp.eq.s32.totalorder %v445, %v454
    %vm464 = vcmp.eq.s32.totalorder %v446, %v454
    %vm465 = vcmp.eq.s32.totalorder %v447, %v454
    %vm466 = vcmp.eq.s32.totalorder %v448, %v454
    %vm467 = vcmp.eq.s32.totalorder %v449, %v454
    %vm468 = vcmp.eq.s32.totalorder %v450, %v454
    %vm469 = vcmp.eq.s32.totalorder %v451, %v454
    %vm470 = vcmp.eq.s32.totalorder %v452, %v454
    %vm471 = vcmp.ge.f32.partialorder %v299, %v344
    %vm472 = vcmp.ge.f32.partialorder %v301, %v344
    %vm473 = vcmp.ge.f32.partialorder %v304, %v344
    %vm474 = vcmp.ge.f32.partialorder %v306, %v344
    %vm475 = vcmp.ge.f32.partialorder %v309, %v344
    %vm476 = vcmp.ge.f32.partialorder %v311, %v344
    %vm477 = vcmp.ge.f32.partialorder %v314, %v344
    %vm478 = vcmp.ge.f32.partialorder %v316, %v344
    %vm479 = vcmp.ge.f32.partialorder %v319, %v344
    %vm480 = vcmp.ge.f32.partialorder %v321, %v344
    %vm481 = vcmp.ge.f32.partialorder %v324, %v344
    %vm482 = vcmp.ge.f32.partialorder %v326, %v344
    %vm483 = vcmp.ge.f32.partialorder %v329, %v344
    %vm484 = vcmp.ge.f32.partialorder %v331, %v344
    %vm485 = vcmp.ge.f32.partialorder %v334, %v344
    %vm486 = vcmp.ge.f32.partialorder %v336, %v344
    %v487 = vsel %vm471, %v299, 0.0
    %v488 = vsel %vm472, %v301, 0.0
    %v489 = vsel %vm473, %v304, 0.0
    %v490 = vsel %vm474, %v306, 0.0
    %v491 = vsel %vm475, %v309, 0.0
    %v492 = vsel %vm476, %v311, 0.0
    %v493 = vsel %vm477, %v314, 0.0
    %v494 = vsel %vm478, %v316, 0.0
    %v495 = vsel %vm479, %v319, 0.0
    %v496 = vsel %vm480, %v321, 0.0
    %v497 = vsel %vm481, %v324, 0.0
    %v498 = vsel %vm482, %v326, 0.0
    %v499 = vsel %vm483, %v329, 0.0
    %v500 = vsel %vm484, %v331, 0.0
    %v501 = vsel %vm485, %v334, 0.0
    %v502 = vsel %vm486, %v336, 0.0
    %v503 = vsel %vm455, 1.0, %v487
    %v504 = vsel %vm456, 1.0, %v488
    %v505 = vsel %vm457, 1.0, %v489
    %v506 = vsel %vm458, 1.0, %v490
    %v507 = vsel %vm459, 1.0, %v491
    %v508 = vsel %vm460, 1.0, %v492
    %v509 = vsel %vm461, 1.0, %v493
    %v510 = vsel %vm462, 1.0, %v494
    %v511 = vsel %vm463, 1.0, %v495
    %v512 = vsel %vm464, 1.0, %v496
    %v513 = vsel %vm465, 1.0, %v497
    %v514 = vsel %vm466, 1.0, %v498
    %v515 = vsel %vm467, 1.0, %v499
    %v516 = vsel %vm468, 1.0, %v500
    %v517 = vsel %vm469, 1.0, %v501
    %v518 = vsel %vm470, 1.0, %v502
    %v519 = vand.u32 2147483647, %v503
    %v520 = vand.u32 2147483647, %v504
    %v521 = vand.u32 2147483647, %v505
    %v522 = vand.u32 2147483647, %v506
    %v523 = vand.u32 2147483647, %v507
    %v524 = vand.u32 2147483647, %v508
    %v525 = vand.u32 2147483647, %v509
    %v526 = vand.u32 2147483647, %v510
    %v527 = vand.u32 2147483647, %v511
    %v528 = vand.u32 2147483647, %v512
    %v529 = vand.u32 2147483647, %v513
    %v530 = vand.u32 2147483647, %v514
    %v531 = vand.u32 2147483647, %v515
    %v532 = vand.u32 2147483647, %v516
    %v533 = vand.u32 2147483647, %v517
    %v534 = vand.u32 2147483647, %v518
    %535 = vadd.xlane.f32.xlu0 %v519
    %v536 = vpop.xlane.xlu0 %535
    %537 = vadd.xlane.f32.xlu0 %v520
    %v538 = vpop.xlane.xlu0 %537
    %539 = vadd.xlane.f32.xlu0 %v521
    %v540 = vpop.xlane.xlu0 %539
    %541 = vadd.xlane.f32.xlu0 %v522
    %v542 = vpop.xlane.xlu0 %541
    %543 = vadd.xlane.f32.xlu0 %v523
    %v544 = vpop.xlane.xlu0 %543
    %545 = vadd.xlane.f32.xlu0 %v524
    %v546 = vpop.xlane.xlu0 %545
    %547 = vadd.xlane.f32.xlu0 %v525
    %v548 = vpop.xlane.xlu0 %547
    %549 = vadd.xlane.f32.xlu0 %v526
    %v550 = vpop.xlane.xlu0 %549
    %551 = vadd.xlane.f32.xlu0 %v527
    %v552 = vpop.xlane.xlu0 %551
    %553 = vadd.xlane.f32.xlu0 %v528
    %v554 = vpop.xlane.xlu0 %553
    %555 = vadd.xlane.f32.xlu0 %v529
    %v556 = vpop.xlane.xlu0 %555
    %557 = vadd.xlane.f32.xlu0 %v530
    %v558 = vpop.xlane.xlu0 %557
    %559 = vadd.xlane.f32.xlu0 %v531
    %v560 = vpop.xlane.xlu0 %559
    %561 = vadd.xlane.f32.xlu0 %v532
    %v562 = vpop.xlane.xlu0 %561
    %563 = vadd.xlane.f32.xlu0 %v533
    %v564 = vpop.xlane.xlu0 %563
    %565 = vadd.xlane.f32.xlu0 %v534
    %v566 = vpop.xlane.xlu0 %565
    %v567 = vmax.f32 %v536, 1e-12
    %v568 = vmax.f32 %v538, 1e-12
    %v569 = vmax.f32 %v540, 1e-12
    %v570 = vmax.f32 %v542, 1e-12
    %v571 = vmax.f32 %v544, 1e-12
    %v572 = vmax.f32 %v546, 1e-12
    %v573 = vmax.f32 %v548, 1e-12
    %v574 = vmax.f32 %v550, 1e-12
    %v575 = vmax.f32 %v552, 1e-12
    %v576 = vmax.f32 %v554, 1e-12
    %v577 = vmax.f32 %v556, 1e-12
    %v578 = vmax.f32 %v558, 1e-12
    %v579 = vmax.f32 %v560, 1e-12
    %v580 = vmax.f32 %v562, 1e-12
    %v581 = vmax.f32 %v564, 1e-12
    %v582 = vmax.f32 %v566, 1e-12
    %v583 = vrcp.pop %v567
    %v584 = vrcp.pop %v568
    %v585 = vrcp.pop %v569
    %v586 = vrcp.pop %v570
    %v587 = vrcp.pop %v571
    %v588 = vrcp.pop %v572
    %v589 = vrcp.pop %v573
    %v590 = vrcp.pop %v574
    %v591 = vrcp.pop %v575
    %v592 = vrcp.pop %v576
    %v593 = vrcp.pop %v577
    %v594 = vrcp.pop %v578
    %v595 = vrcp.pop %v579
    %v596 = vrcp.pop %v580
    %v597 = vrcp.pop %v581
    %v598 = vrcp.pop %v582
    %v599 = vmul.f32 %v503, %v583
    %v600 = vmul.f32 %v504, %v584
    %v601 = vmul.f32 %v505, %v585
    %v602 = vmul.f32 %v506, %v586
    %v603 = vmul.f32 %v507, %v587
    %v604 = vmul.f32 %v508, %v588
    %v605 = vmul.f32 %v509, %v589
    %v606 = vmul.f32 %v510, %v590
    %v607 = vmul.f32 %v511, %v591
    %v608 = vmul.f32 %v512, %v592
    %v609 = vmul.f32 %v513, %v593
    %v610 = vmul.f32 %v514, %v594
    %v611 = vmul.f32 %v515, %v595
    %v612 = vmul.f32 %v516, %v596
    %v613 = vmul.f32 %v517, %v597
    %v614 = vmul.f32 %v518, %v598
    %615 = vst [vmem:[#allocation5] sm:$0xff] %v599
    %616 = vst [vmem:[#allocation5 + $0x8] sm:$0xff] %v600
    %617 = vst [vmem:[#allocation5 + $0x10] sm:$0xff] %v601
    %618 = vst [vmem:[#allocation5 + $0x18] sm:$0xff] %v602
    %619 = vst [vmem:[#allocation5 + $0x20] sm:$0xff] %v603
    %620 = vst [vmem:[#allocation5 + $0x28] sm:$0xff] %v604
    %621 = vst [vmem:[#allocation5 + $0x30] sm:$0xff] %v605
    %622 = vst [vmem:[#allocation5 + $0x38] sm:$0xff] %v606
    %623 = vst [vmem:[#allocation5 + $0x40] sm:$0xff] %v607
    %624 = vst [vmem:[#allocation5 + $0x48] sm:$0xff] %v608
    %625 = vst [vmem:[#allocation5 + $0x50] sm:$0xff] %v609
    %626 = vst [vmem:[#allocation5 + $0x58] sm:$0xff] %v610
    %627 = vst [vmem:[#allocation5 + $0x60] sm:$0xff] %v611
    %628 = vst [vmem:[#allocation5 + $0x68] sm:$0xff] %v612
    %629 = vst [vmem:[#allocation5 + $0x70] sm:$0xff] %v613
    %630 = vst [vmem:[#allocation5 + $0x78] sm:$0xff] %v614
    // Predicated region
    $region17: #{tpu_custom_call.1} parent=1 // pred_check
      _
    $region18: #{tpu_custom_call.1} parent=1 // pred_check_branch
      %632 = sbr.rel (0) target = $region20
    $region19: #{tpu_custom_call.1} parent=1 // pred_region
      %634 = vsyncadd [#allocation4], 0
      %s635 = sshll.u32 [#allocation5], 4
      %s636 = int_to_ptr.vmem [resolvable:$true] %s635
      %s637 = sshll.u32 %s1, 4
      %s638 = int_to_ptr.hbm [resolvable:$true] %s637
      %643 = dma.vmem_to_hbm [thread:$0]  %s636, 2048, %s638, [#allocation4], 128, 128, 8
    $region20: #{tpu_custom_call.1} parent=1 // pred_fallthru
      _
    // Predicated region
    $region21: #{tpu_custom_call.1} parent=1 // pred_check
      _
    $region22: #{tpu_custom_call.1} parent=1 // pred_check_branch
      %645 = sbr.rel (0) target = $region24
    $region23: #{tpu_custom_call.1} parent=1 // pred_region
      %647 = dma.done [#allocation4], 2048
    $region24: #{tpu_custom_call.1} parent=1 // pred_fallthru
      _
    %648 = vsyncpa [#allocation3], 1
    %649 = vsyncpa [#allocation4], 1

</llo_original>
